<compile_context>
chip_gen: v7x
topology: tpu7x:2x2x1
jax: 0.10.0
libtpu: 0.0.40
codegen_flags: <defaults>
</compile_context>

<pallas_src>
import jax
import jax.numpy as jnp
from jax.experimental import pallas as pl
from jax.experimental.pallas import tpu as pltpu


# ----------------------------- Pallas kernel -------------------------------- #
def mof_net_kernel(ea_ref, seg_ref, w1_ref, b1_ref, w2_ref, b2_ref,
                   w3_ref, b3_ref, out_ref, acc_ref, cnt_ref):
    """Per-edge MLP on one edge tile + lane-dense per-graph accumulation."""
    step = pl.program_id(0)

    @pl.when(step == 0)
    def _():
        acc_ref[...] = jnp.zeros_like(acc_ref)
        cnt_ref[...] = jnp.zeros_like(cnt_ref)

    # Layer 1: Linear(D -> H) + ReLU  (bf16 matmul operands, f32 accumulate).
    h = jnp.dot(ea_ref[...], w1_ref[...], preferred_element_type=jnp.float32)
    h = jnp.maximum(h + b1_ref[...], 0.0)
    # Layer 2: Linear(H -> H) + ReLU.
    h = jnp.dot(h.astype(jnp.bfloat16), w2_ref[...],
                preferred_element_type=jnp.float32)
    h = jnp.maximum(h + b2_ref[...], 0.0)

    # Lane-dense segmented sum of hidden features: [G,TILE_E] @ [TILE_E,H].
    seg = seg_ref[...]
    acc_ref[...] += jnp.dot(seg, h.astype(jnp.bfloat16),
                            preferred_element_type=jnp.float32)
    # Per-graph count of real (non-padded) edges for the b3 correction.
    cnt_ref[...] += jnp.sum(seg.astype(jnp.float32), axis=-1, keepdims=True)

    @pl.when(step == pl.num_programs(0) - 1)
    def _():
        # sum_e (h_e @ w3 + b3)  ==  (sum_e h_e) @ w3 + b3 * n_edges
        out = jnp.dot(acc_ref[...], w3_ref[...],
                      preferred_element_type=jnp.float32)
        out_ref[...] = (out + b3_ref[...] * cnt_ref[...]) * 0.5


def mof_net_forward(edge_attr, edge_graph, params, num_graphs, tile_e=128):
    """Glue: pad/tile edges, build per-tile segment one-hot, launch the kernel."""
    w1, b1, w2, b2, w3, b3 = params
    E, D = edge_attr.shape
    G = int(num_graphs)
    H = w1.shape[1]

    num_tiles = pl.cdiv(E, tile_e)
    e_pad = num_tiles * tile_e

    # Pad edges; padded rows get graph id -1 -> all-zero seg column (masked).
    ea = jnp.zeros((e_pad, D), jnp.float32).at[:E].set(edge_attr)
    ea = ea.astype(jnp.bfloat16)
    gid = jnp.full((e_pad,), -1, jnp.int32).at[:E].set(edge_graph)
    seg = (gid[None, :] ==
           jnp.arange(G, dtype=jnp.int32)[:, None]).astype(jnp.bfloat16)

    operands = (ea, seg,
                w1.astype(jnp.bfloat16), b1,
                w2.astype(jnp.bfloat16), b2,
                w3, b3)

    in_specs = [
        pl.BlockSpec((tile_e, D), lambda i: (i, 0)),   # edge_attr tiles
        pl.BlockSpec((G, tile_e), lambda i: (0, i)),   # segment one-hot tiles
        pl.BlockSpec(w1.shape, lambda i: (0, 0)),
        pl.BlockSpec(b1.shape, lambda i: (0, 0)),
        pl.BlockSpec(w2.shape, lambda i: (0, 0)),
        pl.BlockSpec(b2.shape, lambda i: (0, 0)),
        pl.BlockSpec(w3.shape, lambda i: (0, 0)),
        pl.BlockSpec(b3.shape, lambda i: (0, 0)),
    ]

    out = pl.pallas_call(
        mof_net_kernel,
        out_shape=jax.ShapeDtypeStruct((G, 1), jnp.float32),
        grid=(num_tiles,),
        in_specs=in_specs,
        # Same output block every step (accumulator-resident); written only in
        # the final step.  (G is tiny here, so a lane-dense (1, G) layout is
        # not worth the extra transpose.)
        out_specs=pl.BlockSpec((G, 1), lambda i: (0, 0)),
        scratch_shapes=[pltpu.VMEM((G, H), jnp.float32),   # pooled hidden acc
                        pltpu.VMEM((G, 1), jnp.float32)],  # per-graph edge count
        compiler_params=pltpu.CompilerParams(
            dimension_semantics=("arbitrary",)),
    )(*operands)

    # x = gaddp(...); x = x.squeeze() / 2   (the /2 is already inside the kernel)
    return jnp.squeeze(out, axis=-1)


# ----------------------------- Pure-JAX reference --------------------------- #
def mof_net_reference(x, edge_index, batch, edge_attr, params, num_graphs,
                      match_bf16=False):
    """Explicit MOLGCN (scatter-add to nodes) + global_add_pool + squeeze/2.

    With match_bf16=True the matmul operands are rounded to bf16 exactly like
    the kernel, so the comparison isolates reassociation error only.
    """
    w1, b1, w2, b2, w3, b3 = params
    cast = (lambda a: a.astype(jnp.bfloat16)) if match_bf16 else (lambda a: a)

    h = jnp.dot(cast(edge_attr), cast(w1), preferred_element_type=jnp.float32)
    h = jnp.maximum(h + b1, 0.0)
    h = jnp.dot(cast(h), cast(w2), preferred_element_type=jnp.float32)
    h = jnp.maximum(h + b2, 0.0)
    if match_bf16:
        h = h.astype(jnp.bfloat16).astype(jnp.float32)
    msg = jnp.dot(h, w3) + b3                                     # (E, 1)

    num_nodes = x.shape[0]
    # aggregate messages at target nodes (PyG flow='source_to_target': index 1)
    node_out = jnp.zeros((num_nodes, 1), jnp.float32).at[edge_index[1]].add(msg)
    # global add pool by graph id
    pooled = jnp.zeros((num_graphs, 1), jnp.float32).at[batch].add(node_out)
    return jnp.squeeze(pooled, axis=-1) / 2.0


# ----------------------------- Setup / demo --------------------------------- #
if __name__ == "__main__":
    key = jax.random.PRNGKey(0)

    # Synthetic batched graph: G=2 chain graphs of 100 nodes each ->
    # 99 undirected bonds each, duplicated -> 198 directed edges each, E=396.
    G = 2
    NODES_PER_G = 100
    N = G * NODES_PER_G
    D_NODE = 4          # node feature dim (unused by the MOLGCN message)
    D_EDGE = 8          # edge (bond) feature dim
    HIDDEN = 32

    bonds = jnp.stack([jnp.arange(NODES_PER_G - 1, dtype=jnp.int32),
                       jnp.arange(1, NODES_PER_G, dtype=jnp.int32)], axis=1)
    src_list, dst_list, gid_list = [], [], []
    for g in range(G):
        off = g * NODES_PER_G
        src_list.append(jnp.concatenate([bonds[:, 0], bonds[:, 1]]) + off)
        dst_list.append(jnp.concatenate([bonds[:, 1], bonds[:, 0]]) + off)
        gid_list.append(jnp.full((2 * bonds.shape[0],), g, dtype=jnp.int32))
    edge_index = jnp.stack([jnp.concatenate(src_list),
                            jnp.concatenate(dst_list)], axis=0)   # (2, E)
    edge_graph = jnp.concatenate(gid_list)                        # (E,)
    E = edge_index.shape[1]
    batch = jnp.repeat(jnp.arange(G, dtype=jnp.int32), NODES_PER_G)  # (N,)

    k1, k2, k3, k4, k5, k6, k7, k8 = jax.random.split(key, 8)
    x = jax.random.normal(k1, (N, D_NODE), dtype=jnp.float32)
    edge_attr = jax.random.normal(k2, (E, D_EDGE), dtype=jnp.float32)

    # MLP params: Linear(D_EDGE,H) -> ReLU -> Linear(H,H) -> ReLU -> Linear(H,1)
    w1 = jax.random.normal(k3, (D_EDGE, HIDDEN), dtype=jnp.float32) * 0.1
    b1 = jax.random.normal(k6, (1, HIDDEN), dtype=jnp.float32) * 0.1
    w2 = jax.random.normal(k4, (HIDDEN, HIDDEN), dtype=jnp.float32) * 0.1
    b2 = jax.random.normal(k7, (1, HIDDEN), dtype=jnp.float32) * 0.1
    w3 = jax.random.normal(k5, (HIDDEN, 1), dtype=jnp.float32) * 0.1
    b3 = jax.random.normal(k8, (1, 1), dtype=jnp.float32) * 0.1
    params = (w1, b1, w2, b2, w3, b3)

    out = jax.block_until_ready(
        mof_net_forward(edge_attr, edge_graph, params, G, tile_e=128))

    ref_matched = mof_net_reference(x, edge_index, batch, edge_attr, params, G,
                                    match_bf16=True)
    ref_f32 = mof_net_reference(x, edge_index, batch, edge_attr, params, G,
                                match_bf16=False)

    assert out.shape == (G,), out.shape
    # Tight check against the bf16-matched reference (same operand rounding).
    assert jnp.allclose(out, ref_matched, atol=1e-3, rtol=1e-3), (out, ref_matched)
    # Loose sanity check against the pure-f32 reference (bf16 rounding error).
    assert jnp.allclose(out, ref_f32, atol=0.5, rtol=0.05), (out, ref_f32)

    print("KERNEL_OK")
</pallas_src>

<mosaic_0001>
module attributes {stable_mosaic.version = 11 : i64} {
  func.func @mof_net_kernel(%arg0: i32, %arg1: memref<128x8xbf16, #tpu.memory_space<vmem>>, %arg2: memref<2x128xbf16, #tpu.memory_space<vmem>>, %arg3: memref<8x32xbf16, #tpu.memory_space<vmem>>, %arg4: memref<1x32xf32, #tpu.memory_space<vmem>>, %arg5: memref<32x32xbf16, #tpu.memory_space<vmem>>, %arg6: memref<1x32xf32, #tpu.memory_space<vmem>>, %arg7: memref<32x1xf32, #tpu.memory_space<vmem>>, %arg8: memref<1x1xf32, #tpu.memory_space<vmem>>, %arg9: memref<2x1xf32, #tpu.memory_space<vmem>>, %arg10: memref<2x32xf32, #tpu.memory_space<vmem>>, %arg11: memref<2x1xf32, #tpu.memory_space<vmem>>) attributes {dimension_semantics = [#tpu.dimension_semantics<arbitrary>], iteration_bounds = array<i64: 4>, scalar_prefetch = 0 : i64, scratch_operands = 2 : i64, tpu.core_type = #tpu.core_type<tc>, window_params = [{transform_indices = @transform_0, window_bounds = array<i64: 128, 8>}, {transform_indices = @transform_1, window_bounds = array<i64: 2, 128>}, {pipeline_mode = #tpu.pipeline_mode<synchronous>, transform_indices = @transform_2, window_bounds = array<i64: 8, 32>}, {pipeline_mode = #tpu.pipeline_mode<synchronous>, transform_indices = @transform_3, window_bounds = array<i64: 1, 32>}, {pipeline_mode = #tpu.pipeline_mode<synchronous>, transform_indices = @transform_4, window_bounds = array<i64: 32, 32>}, {pipeline_mode = #tpu.pipeline_mode<synchronous>, transform_indices = @transform_5, window_bounds = array<i64: 1, 32>}, {pipeline_mode = #tpu.pipeline_mode<synchronous>, transform_indices = @transform_6, window_bounds = array<i64: 32, 1>}, {pipeline_mode = #tpu.pipeline_mode<synchronous>, transform_indices = @transform_7, window_bounds = array<i64: 1, 1>}, {pipeline_mode = #tpu.pipeline_mode<synchronous>, transform_indices = @transform_8, window_bounds = array<i64: 2, 1>}]} {
    %c0_i32 = arith.constant 0 : i32
    %0 = arith.cmpi eq, %arg0, %c0_i32 : i32
    %1 = arith.extui %0 : i1 to i32
    %c0_i32_0 = arith.constant 0 : i32
    %2 = arith.cmpi ne, %1, %c0_i32_0 : i32
    scf.if %2 {
      %cst_26 = arith.constant 0.000000e+00 : f32
      %34 = vector.broadcast %cst_26 : f32 to vector<2x32xf32>
      %c0_27 = arith.constant 0 : index
      %c0_28 = arith.constant 0 : index
      %35 = vector.load %arg10[%c0_27, %c0_28] : memref<2x32xf32, #tpu.memory_space<vmem>>, vector<2x32xf32>
      tpu.vector_store %arg10[%c0_27, %c0_28], %34 {strides = array<i32>} : memref<2x32xf32, #tpu.memory_space<vmem>>, vector<2x32xf32>,
      %cst_29 = arith.constant 0.000000e+00 : f32
      %36 = vector.broadcast %cst_29 : f32 to vector<2x1xf32>
      %c0_30 = arith.constant 0 : index
      %c0_31 = arith.constant 0 : index
      %37 = vector.load %arg11[%c0_30, %c0_31] : memref<2x1xf32, #tpu.memory_space<vmem>>, vector<2x1xf32>
      tpu.vector_store %arg11[%c0_30, %c0_31], %36 {strides = array<i32>} : memref<2x1xf32, #tpu.memory_space<vmem>>, vector<2x1xf32>,
    } else {
    }
    %c0 = arith.constant 0 : index
    %c0_1 = arith.constant 0 : index
    %3 = vector.load %arg1[%c0, %c0_1] : memref<128x8xbf16, #tpu.memory_space<vmem>>, vector<128x8xbf16>
    %c0_2 = arith.constant 0 : index
    %c0_3 = arith.constant 0 : index
    %4 = vector.load %arg3[%c0_2, %c0_3] : memref<8x32xbf16, #tpu.memory_space<vmem>>, vector<8x32xbf16>
    %cst = arith.constant dense<0.000000e+00> : vector<128x32xf32>
    %5 = tpu.matmul %3, %4, %cst {dimension_numbers = #tpu.dot_dimension_numbers<[1], [0], [0], [1], [0, 0, 1, 1], [], []>} : vector<128x8xbf16>, vector<8x32xbf16>, vector<128x32xf32> -> vector<128x32xf32>
    %c0_4 = arith.constant 0 : index
    %c0_5 = arith.constant 0 : index
    %6 = vector.load %arg4[%c0_4, %c0_5] : memref<1x32xf32, #tpu.memory_space<vmem>>, vector<1x32xf32>
    %7 = vector.broadcast %6 : vector<1x32xf32> to vector<128x32xf32>
    %8 = arith.addf %5, %7 : vector<128x32xf32>
    %cst_6 = arith.constant 0.000000e+00 : f32
    %9 = vector.broadcast %cst_6 : f32 to vector<128x32xf32>
    %10 = arith.maximumf %8, %9 : vector<128x32xf32>
    %11 = arith.truncf %10 : vector<128x32xf32> to vector<128x32xbf16>
    %c0_7 = arith.constant 0 : index
    %c0_8 = arith.constant 0 : index
    %12 = vector.load %arg5[%c0_7, %c0_8] : memref<32x32xbf16, #tpu.memory_space<vmem>>, vector<32x32xbf16>
    %cst_9 = arith.constant dense<0.000000e+00> : vector<128x32xf32>
    %13 = tpu.matmul %11, %12, %cst_9 {dimension_numbers = #tpu.dot_dimension_numbers<[1], [0], [0], [1], [0, 0, 1, 1], [], []>} : vector<128x32xbf16>, vector<32x32xbf16>, vector<128x32xf32> -> vector<128x32xf32>
    %c0_10 = arith.constant 0 : index
    %c0_11 = arith.constant 0 : index
    %14 = vector.load %arg6[%c0_10, %c0_11] : memref<1x32xf32, #tpu.memory_space<vmem>>, vector<1x32xf32>
    %15 = vector.broadcast %14 : vector<1x32xf32> to vector<128x32xf32>
    %16 = arith.addf %13, %15 : vector<128x32xf32>
    %cst_12 = arith.constant 0.000000e+00 : f32
    %17 = vector.broadcast %cst_12 : f32 to vector<128x32xf32>
    %18 = arith.maximumf %16, %17 : vector<128x32xf32>
    %c0_13 = arith.constant 0 : index
    %c0_14 = arith.constant 0 : index
    %19 = vector.load %arg2[%c0_13, %c0_14] : memref<2x128xbf16, #tpu.memory_space<vmem>>, vector<2x128xbf16>
    %c0_15 = arith.constant 0 : index
    %c0_16 = arith.constant 0 : index
    %20 = vector.load %arg10[%c0_15, %c0_16] : memref<2x32xf32, #tpu.memory_space<vmem>>, vector<2x32xf32>
    %21 = arith.truncf %18 : vector<128x32xf32> to vector<128x32xbf16>
    %cst_17 = arith.constant dense<0.000000e+00> : vector<2x32xf32>
    %22 = tpu.matmul %19, %21, %cst_17 {dimension_numbers = #tpu.dot_dimension_numbers<[1], [0], [0], [1], [0, 0, 1, 1], [], []>} : vector<2x128xbf16>, vector<128x32xbf16>, vector<2x32xf32> -> vector<2x32xf32>
    %23 = arith.addf %20, %22 : vector<2x32xf32>
    %c0_18 = arith.constant 0 : index
    %c0_19 = arith.constant 0 : index
    %24 = vector.load %arg10[%c0_18, %c0_19] : memref<2x32xf32, #tpu.memory_space<vmem>>, vector<2x32xf32>
    tpu.vector_store %arg10[%c0_18, %c0_19], %23 {strides = array<i32>} : memref<2x32xf32, #tpu.memory_space<vmem>>, vector<2x32xf32>,
    %c0_20 = arith.constant 0 : index
    %c0_21 = arith.constant 0 : index
    %25 = vector.load %arg11[%c0_20, %c0_21] : memref<2x1xf32, #tpu.memory_space<vmem>>, vector<2x1xf32>
    %26 = arith.extf %19 : vector<2x128xbf16> to vector<2x128xf32>
    %cst_22 = arith.constant dense<0.000000e+00> : vector<2xf32>
    %27 = vector.multi_reduction <add>, %26, %cst_22 [1] : vector<2x128xf32> to vector<2xf32>
    %28 = vector.shape_cast %27 : vector<2xf32> to vector<2x1xf32>
    %29 = arith.addf %25, %28 : vector<2x1xf32>
    %c0_23 = arith.constant 0 : index
    %c0_24 = arith.constant 0 : index
    %30 = vector.load %arg11[%c0_23, %c0_24] : memref<2x1xf32, #tpu.memory_space<vmem>>, vector<2x1xf32>
    tpu.vector_store %arg11[%c0_23, %c0_24], %29 {strides = array<i32>} : memref<2x1xf32, #tpu.memory_space<vmem>>, vector<2x1xf32>,
    %c3_i32 = arith.constant 3 : i32
    %31 = arith.cmpi eq, %arg0, %c3_i32 : i32
    %32 = arith.extui %31 : i1 to i32
    %c0_i32_25 = arith.constant 0 : i32
    %33 = arith.cmpi ne, %32, %c0_i32_25 : i32
    scf.if %33 {
      %c0_26 = arith.constant 0 : index
      %c0_27 = arith.constant 0 : index
      %34 = vector.load %arg10[%c0_26, %c0_27] : memref<2x32xf32, #tpu.memory_space<vmem>>, vector<2x32xf32>
      %c0_28 = arith.constant 0 : index
      %c0_29 = arith.constant 0 : index
      %35 = vector.load %arg7[%c0_28, %c0_29] : memref<32x1xf32, #tpu.memory_space<vmem>>, vector<32x1xf32>
      %cst_30 = arith.constant dense<0.000000e+00> : vector<2x1xf32>
      %36 = tpu.matmul %34, %35, %cst_30 {dimension_numbers = #tpu.dot_dimension_numbers<[1], [0], [0], [1], [0, 0, 1, 1], [], []>} : vector<2x32xf32>, vector<32x1xf32>, vector<2x1xf32> -> vector<2x1xf32>
      %c0_31 = arith.constant 0 : index
      %c0_32 = arith.constant 0 : index
      %37 = vector.load %arg8[%c0_31, %c0_32] : memref<1x1xf32, #tpu.memory_space<vmem>>, vector<1x1xf32>
      %c0_33 = arith.constant 0 : index
      %c0_34 = arith.constant 0 : index
      %38 = vector.load %arg11[%c0_33, %c0_34] : memref<2x1xf32, #tpu.memory_space<vmem>>, vector<2x1xf32>
      %39 = vector.broadcast %37 : vector<1x1xf32> to vector<2x1xf32>
      %40 = arith.mulf %39, %38 : vector<2x1xf32>
      %41 = arith.addf %36, %40 : vector<2x1xf32>
      %cst_35 = arith.constant 5.000000e-01 : f32
      %42 = vector.broadcast %cst_35 : f32 to vector<2x1xf32>
      %43 = arith.mulf %41, %42 : vector<2x1xf32>
      %c0_36 = arith.constant 0 : index
      %c0_37 = arith.constant 0 : index
      %44 = vector.load %arg9[%c0_36, %c0_37] : memref<2x1xf32, #tpu.memory_space<vmem>>, vector<2x1xf32>
      tpu.vector_store %arg9[%c0_36, %c0_37], %43 {strides = array<i32>} : memref<2x1xf32, #tpu.memory_space<vmem>>, vector<2x1xf32>,
    } else {
    }
    return
  }
  func.func @transform_0(%arg0: i32) -> (i32, i32) {
    %c0_i32 = arith.constant 0 : i32
    %c0_i32_0 = arith.constant 0 : i32
    return %arg0, %c0_i32 : i32, i32
  }
  func.func @transform_1(%arg0: i32) -> (i32, i32) {
    %c0_i32 = arith.constant 0 : i32
    %c0_i32_0 = arith.constant 0 : i32
    return %c0_i32, %arg0 : i32, i32
  }
  func.func @transform_2(%arg0: i32) -> (i32, i32) {
    %c0_i32 = arith.constant 0 : i32
    %c0_i32_0 = arith.constant 0 : i32
    %c0_i32_1 = arith.constant 0 : i32
    return %c0_i32, %c0_i32_0 : i32, i32
  }
  func.func @transform_3(%arg0: i32) -> (i32, i32) {
    %c0_i32 = arith.constant 0 : i32
    %c0_i32_0 = arith.constant 0 : i32
    %c0_i32_1 = arith.constant 0 : i32
    return %c0_i32, %c0_i32_0 : i32, i32
  }
  func.func @transform_4(%arg0: i32) -> (i32, i32) {
    %c0_i32 = arith.constant 0 : i32
    %c0_i32_0 = arith.constant 0 : i32
    %c0_i32_1 = arith.constant 0 : i32
    return %c0_i32, %c0_i32_0 : i32, i32
  }
  func.func @transform_5(%arg0: i32) -> (i32, i32) {
    %c0_i32 = arith.constant 0 : i32
    %c0_i32_0 = arith.constant 0 : i32
    %c0_i32_1 = arith.constant 0 : i32
    return %c0_i32, %c0_i32_0 : i32, i32
  }
  func.func @transform_6(%arg0: i32) -> (i32, i32) {
    %c0_i32 = arith.constant 0 : i32
    %c0_i32_0 = arith.constant 0 : i32
    %c0_i32_1 = arith.constant 0 : i32
    return %c0_i32, %c0_i32_0 : i32, i32
  }
  func.func @transform_7(%arg0: i32) -> (i32, i32) {
    %c0_i32 = arith.constant 0 : i32
    %c0_i32_0 = arith.constant 0 : i32
    %c0_i32_1 = arith.constant 0 : i32
    return %c0_i32, %c0_i32_0 : i32, i32
  }
  func.func @transform_8(%arg0: i32) -> (i32, i32) {
    %c0_i32 = arith.constant 0 : i32
    %c0_i32_0 = arith.constant 0 : i32
    %c0_i32_1 = arith.constant 0 : i32
    return %c0_i32, %c0_i32_0 : i32, i32
  }
}

</mosaic_0001>

<llo_original>
// kernel: tpu_custom_call.1
$region0: #{tpu_custom_call.1}
  #allocation0 [shape = 'u32[]', space=smem, size = 0x4, offset = 0x4, fixed_abs, tag = 'smem constant byte address 0x4 - core index']
  #allocation1 [shape = 'u32[144,128]{1,0:T(1,128)}', space=vmem, size = 0x12000, scoped, tag = 'internal scratch']
  #allocation2 [shape = 'f32[2,32]{1,0:T(2,128)}', space=vmem, size = 0x400, scoped, tag = 'scratch operand']
  #allocation3 [shape = 'f32[2,1]{1,0:T(2,128)}', space=vmem, size = 0x400, scoped, tag = 'scratch operand']
  #allocation4 [shape = 'f32[1,1]{1,0:T(1,128)S(1)}', space=vmem, size = 0x200, scoped, tag = 'scoped memory for tpu_custom_call.1']
  %s0 = inlined_call_operand.vmem [shape: bf16[512,8], index: 0, kind: input, shape index: {}]
  %s1 = inlined_call_operand.vmem [shape: bf16[2,512], index: 1, kind: input, shape index: {}]
  %s2 = inlined_call_operand.vmem [shape: bf16[8,32], index: 2, kind: input, shape index: {}]
  %s3 = inlined_call_operand.vmem [shape: f32[1,32], index: 3, kind: input, shape index: {}]
  %s4 = inlined_call_operand.vmem [shape: bf16[32,32], index: 4, kind: input, shape index: {}]
  %s5 = inlined_call_operand.vmem [shape: f32[1,32], index: 5, kind: input, shape index: {}]
  %s6 = inlined_call_operand.vmem [shape: f32[32,1], index: 6, kind: input, shape index: {}]
  %s7 = inlined_call_operand.<no memory space> [shape: f32[1,1], index: 7, kind: input, shape index: {}]
  %s8 = inlined_call_operand.vmem [shape: f32[2,1], index: 8, kind: output, shape index: {}]
  %s9 = sld [smem:[#allocation0]]
  $region73: #{tpu_custom_call.1} parent=0
    _
  %s11 = ssub.s32 1, %s9
  %s12 = scalar_select 0, %s11, %s9
  %v13 = vstv %s7
  %14 = vst [vmem:[#allocation4] sm:$0x1] %v13
  loop: start=0, step=1, limit=6
  $region2: #{tpu_custom_call.1} parent=0 // loop_pre_header
    _
  $region3: #{tpu_custom_call.1} parent=0 // loop_header
    %s16 = sphi 0, %s20
    %p17 = scmp.ge.s32.totalorder %s16, 6
    %s26 = sphi 0, %s28
    %s29 = sphi 0, %s26
    %s30 = sphi 0, %s29
    %s46 = sphi 0, %s30
    %s52 = sphi 0, %s54
    %s55 = sphi 0, %s52
    %s56 = sphi 0, %s55
    %s72 = sphi 0, %s56
    %s76 = sphi 0, %s76
    %s78 = sphi 0, %s76
    %s79 = sphi 0, %s78
    %s93 = sphi 0, %s79
    %s97 = sphi 0, %s97
    %s99 = sphi 0, %s97
    %s100 = sphi 0, %s99
    %s114 = sphi 0, %s100
    %s118 = sphi 0, %s118
    %s120 = sphi 0, %s118
    %s121 = sphi 0, %s120
    %s135 = sphi 0, %s121
    %s139 = sphi 0, %s139
    %s141 = sphi 0, %s139
    %s142 = sphi 0, %s141
    %s156 = sphi 0, %s142
    %s160 = sphi 0, %s160
    %s162 = sphi 0, %s160
    %s163 = sphi 0, %s162
    %s177 = sphi 0, %s163
    %s181 = sphi 0, %s181
    %s183 = sphi 0, %s181
    %s184 = sphi 0, %s183
    %s198 = sphi 0, %s184
    %s202 = sphi 0, %s202
    %s204 = sphi 0, %s202
    %s205 = sphi 0, %s204
    %s219 = sphi 0, %s205
  $region4: #{tpu_custom_call.1} parent=0 // loop_header_branch
    %19 = sbr.rel (%p17) target = $region8
  $region5: #{tpu_custom_call.1} parent=0 // loop_body
    %s21 = ssub.s32 %s16, 1
    %s22 = ssub.s32 %s16, 2
    %s23 = sadd.s32 %s16, 1
    %s24 = ssub.s32 %s16, %s23
    %p25 = scmp.eq.s32.totalorder %s24, 0
    %s27 = sadd.s32 %s26, 1
    %s28 = scalar_select %p25, %s26, %s27
    %p31 = pneg %p25
    %p32 = scmp.eq.s32.totalorder %s16, 3
    %p33 = por %p31, %p32
    %p34 = scmp.ne.s32.totalorder %s26, %s29
    %p35 = scmp.eq.s32.totalorder %s16, 0
    %p36 = por %p34, %p35
    %p37 = scmp.ne.s32.totalorder %s26, %s29
    %p38 = scmp.eq.s32.totalorder %s21, 3
    %p39 = por %p37, %p38
    %p40 = scmp.ne.s32.totalorder %s29, %s30
    %p41 = scmp.eq.s32.totalorder %s21, 0
    %p42 = por %p40, %p41
    %p43 = scmp.ne.s32.totalorder %s29, %s30
    %p44 = scmp.eq.s32.totalorder %s22, 3
    %p45 = por %p43, %p44
    %p47 = scmp.ne.s32.totalorder %s30, %s46
    %p48 = scmp.eq.s32.totalorder %s22, 0
    %p49 = por %p47, %p48
    %s50 = ssub.s32 %s16, %s23
    %p51 = scmp.eq.s32.totalorder %s50, 0
    %s53 = sadd.s32 %s52, 1
    %s54 = scalar_select %p51, %s52, %s53
    %p57 = pneg %p51
    %p58 = scmp.eq.s32.totalorder %s16, 3
    %p59 = por %p57, %p58
    %p60 = scmp.ne.s32.totalorder %s52, %s55
    %p61 = scmp.eq.s32.totalorder %s16, 0
    %p62 = por %p60, %p61
    %p63 = scmp.ne.s32.totalorder %s52, %s55
    %p64 = scmp.eq.s32.totalorder %s21, 3
    %p65 = por %p63, %p64
    %p66 = scmp.ne.s32.totalorder %s55, %s56
    %p67 = scmp.eq.s32.totalorder %s21, 0
    %p68 = por %p66, %p67
    %p69 = scmp.ne.s32.totalorder %s55, %s56
    %p70 = scmp.eq.s32.totalorder %s22, 3
    %p71 = por %p69, %p70
    %p73 = scmp.ne.s32.totalorder %s56, %s72
    %p74 = scmp.eq.s32.totalorder %s22, 0
    %p75 = por %p73, %p74
    %s77 = sadd.s32 %s76, 1
    %p80 = scmp.eq.s32.totalorder %s16, 3
    %p81 = scmp.ne.s32.totalorder %s76, %s78
    %p82 = scmp.eq.s32.totalorder %s16, 0
    %p83 = por %p81, %p82
    %p84 = scmp.ne.s32.totalorder %s76, %s78
    %p85 = scmp.eq.s32.totalorder %s21, 3
    %p86 = por %p84, %p85
    %p87 = scmp.ne.s32.totalorder %s78, %s79
    %p88 = scmp.eq.s32.totalorder %s21, 0
    %p89 = por %p87, %p88
    %p90 = scmp.ne.s32.totalorder %s78, %s79
    %p91 = scmp.eq.s32.totalorder %s22, 3
    %p92 = por %p90, %p91
    %p94 = scmp.ne.s32.totalorder %s79, %s93
    %p95 = scmp.eq.s32.totalorder %s22, 0
    %p96 = por %p94, %p95
    %s98 = sadd.s32 %s97, 1
    %p101 = scmp.eq.s32.totalorder %s16, 3
    %p102 = scmp.ne.s32.totalorder %s97, %s99
    %p103 = scmp.eq.s32.totalorder %s16, 0
    %p104 = por %p102, %p103
    %p105 = scmp.ne.s32.totalorder %s97, %s99
    %p106 = scmp.eq.s32.totalorder %s21, 3
    %p107 = por %p105, %p106
    %p108 = scmp.ne.s32.totalorder %s99, %s100
    %p109 = scmp.eq.s32.totalorder %s21, 0
    %p110 = por %p108, %p109
    %p111 = scmp.ne.s32.totalorder %s99, %s100
    %p112 = scmp.eq.s32.totalorder %s22, 3
    %p113 = por %p111, %p112
    %p115 = scmp.ne.s32.totalorder %s100, %s114
    %p116 = scmp.eq.s32.totalorder %s22, 0
    %p117 = por %p115, %p116
    %s119 = sadd.s32 %s118, 1
    %p122 = scmp.eq.s32.totalorder %s16, 3
    %p123 = scmp.ne.s32.totalorder %s118, %s120
    %p124 = scmp.eq.s32.totalorder %s16, 0
    %p125 = por %p123, %p124
    %p126 = scmp.ne.s32.totalorder %s118, %s120
    %p127 = scmp.eq.s32.totalorder %s21, 3
    %p128 = por %p126, %p127
    %p129 = scmp.ne.s32.totalorder %s120, %s121
    %p130 = scmp.eq.s32.totalorder %s21, 0
    %p131 = por %p129, %p130
    %p132 = scmp.ne.s32.totalorder %s120, %s121
    %p133 = scmp.eq.s32.totalorder %s22, 3
    %p134 = por %p132, %p133
    %p136 = scmp.ne.s32.totalorder %s121, %s135
    %p137 = scmp.eq.s32.totalorder %s22, 0
    %p138 = por %p136, %p137
    %s140 = sadd.s32 %s139, 1
    %p143 = scmp.eq.s32.totalorder %s16, 3
    %p144 = scmp.ne.s32.totalorder %s139, %s141
    %p145 = scmp.eq.s32.totalorder %s16, 0
    %p146 = por %p144, %p145
    %p147 = scmp.ne.s32.totalorder %s139, %s141
    %p148 = scmp.eq.s32.totalorder %s21, 3
    %p149 = por %p147, %p148
    %p150 = scmp.ne.s32.totalorder %s141, %s142
    %p151 = scmp.eq.s32.totalorder %s21, 0
    %p152 = por %p150, %p151
    %p153 = scmp.ne.s32.totalorder %s141, %s142
    %p154 = scmp.eq.s32.totalorder %s22, 3
    %p155 = por %p153, %p154
    %p157 = scmp.ne.s32.totalorder %s142, %s156
    %p158 = scmp.eq.s32.totalorder %s22, 0
    %p159 = por %p157, %p158
    %s161 = sadd.s32 %s160, 1
    %p164 = scmp.eq.s32.totalorder %s16, 3
    %p165 = scmp.ne.s32.totalorder %s160, %s162
    %p166 = scmp.eq.s32.totalorder %s16, 0
    %p167 = por %p165, %p166
    %p168 = scmp.ne.s32.totalorder %s160, %s162
    %p169 = scmp.eq.s32.totalorder %s21, 3
    %p170 = por %p168, %p169
    %p171 = scmp.ne.s32.totalorder %s162, %s163
    %p172 = scmp.eq.s32.totalorder %s21, 0
    %p173 = por %p171, %p172
    %p174 = scmp.ne.s32.totalorder %s162, %s163
    %p175 = scmp.eq.s32.totalorder %s22, 3
    %p176 = por %p174, %p175
    %p178 = scmp.ne.s32.totalorder %s163, %s177
    %p179 = scmp.eq.s32.totalorder %s22, 0
    %p180 = por %p178, %p179
    %s182 = sadd.s32 %s181, 1
    %p185 = scmp.eq.s32.totalorder %s16, 3
    %p186 = scmp.ne.s32.totalorder %s181, %s183
    %p187 = scmp.eq.s32.totalorder %s16, 0
    %p188 = por %p186, %p187
    %p189 = scmp.ne.s32.totalorder %s181, %s183
    %p190 = scmp.eq.s32.totalorder %s21, 3
    %p191 = por %p189, %p190
    %p192 = scmp.ne.s32.totalorder %s183, %s184
    %p193 = scmp.eq.s32.totalorder %s21, 0
    %p194 = por %p192, %p193
    %p195 = scmp.ne.s32.totalorder %s183, %s184
    %p196 = scmp.eq.s32.totalorder %s22, 3
    %p197 = por %p195, %p196
    %p199 = scmp.ne.s32.totalorder %s184, %s198
    %p200 = scmp.eq.s32.totalorder %s22, 0
    %p201 = por %p199, %p200
    %s203 = sadd.s32 %s202, 1
    %p206 = scmp.eq.s32.totalorder %s16, 3
    %p207 = scmp.ne.s32.totalorder %s202, %s204
    %p208 = scmp.eq.s32.totalorder %s16, 0
    %p209 = por %p207, %p208
    %p210 = scmp.ne.s32.totalorder %s202, %s204
    %p211 = scmp.eq.s32.totalorder %s21, 3
    %p212 = por %p210, %p211
    %p213 = scmp.ne.s32.totalorder %s204, %s205
    %p214 = scmp.eq.s32.totalorder %s21, 0
    %p215 = por %p213, %p214
    %p216 = scmp.ne.s32.totalorder %s204, %s205
    %p217 = scmp.eq.s32.totalorder %s22, 3
    %p218 = por %p216, %p217
    %p220 = scmp.ne.s32.totalorder %s205, %s219
    %p221 = scmp.eq.s32.totalorder %s22, 0
    %p222 = por %p220, %p221
    %p223 = scmp.le.s32.totalorder 1, %s16
    %p224 = scmp.lt.s32.totalorder %s16, 5
    %p225 = pnand %p223, %p224
    %p226 = pneg %p225
    // Predicated region
    $region9: #{tpu_custom_call.1} parent=5 // pred_check
      _
    $region10: #{tpu_custom_call.1} parent=5 // pred_check_branch
      %228 = sbr.rel (%p225) target = $region12
    $region11: #{tpu_custom_call.1} parent=5 // pred_region
      %s229 = ssub.s32 %s16, 1
      // Predicated region
      $region13: #{tpu_custom_call.1} parent=11 // pred_check
        %p230 = pneg %p89
      $region14: #{tpu_custom_call.1} parent=11 // pred_check_branch
        %232 = sbr.rel (%p230) target = $region16
      $region15: #{tpu_custom_call.1} parent=11 // pred_region
        _
      $region16: #{tpu_custom_call.1} parent=11 // pred_fallthru
        _
      // Predicated region
      $region17: #{tpu_custom_call.1} parent=11 // pred_check
        %p233 = pneg %p110
      $region18: #{tpu_custom_call.1} parent=11 // pred_check_branch
        %235 = sbr.rel (%p233) target = $region20
      $region19: #{tpu_custom_call.1} parent=11 // pred_region
        _
      $region20: #{tpu_custom_call.1} parent=11 // pred_fallthru
        _
      // Predicated region
      $region21: #{tpu_custom_call.1} parent=11 // pred_check
        %p236 = pneg %p131
      $region22: #{tpu_custom_call.1} parent=11 // pred_check_branch
        %238 = sbr.rel (%p236) target = $region24
      $region23: #{tpu_custom_call.1} parent=11 // pred_region
        _
      $region24: #{tpu_custom_call.1} parent=11 // pred_fallthru
        _
      // Predicated region
      $region25: #{tpu_custom_call.1} parent=11 // pred_check
        %p239 = pneg %p152
      $region26: #{tpu_custom_call.1} parent=11 // pred_check_branch
        %241 = sbr.rel (%p239) target = $region28
      $region27: #{tpu_custom_call.1} parent=11 // pred_region
        _
      $region28: #{tpu_custom_call.1} parent=11 // pred_fallthru
        _
      // Predicated region
      $region29: #{tpu_custom_call.1} parent=11 // pred_check
        %p242 = pneg %p173
      $region30: #{tpu_custom_call.1} parent=11 // pred_check_branch
        %244 = sbr.rel (%p242) target = $region32
      $region31: #{tpu_custom_call.1} parent=11 // pred_region
        _
      $region32: #{tpu_custom_call.1} parent=11 // pred_fallthru
        _
      // Predicated region
      $region33: #{tpu_custom_call.1} parent=11 // pred_check
        %p245 = pneg %p194
      $region34: #{tpu_custom_call.1} parent=11 // pred_check_branch
        %247 = sbr.rel (%p245) target = $region36
      $region35: #{tpu_custom_call.1} parent=11 // pred_region
        _
      $region36: #{tpu_custom_call.1} parent=11 // pred_fallthru
        _
    $region12: #{tpu_custom_call.1} parent=5 // pred_fallthru
      _
    %p248 = scmp.lt.s32.totalorder %s16, 4
    // Predicated region
    $region37: #{tpu_custom_call.1} parent=5 // pred_check
      %p249 = pneg %p248
    $region38: #{tpu_custom_call.1} parent=5 // pred_check_branch
      %251 = sbr.rel (%p249) target = $region40
    $region39: #{tpu_custom_call.1} parent=5 // pred_region
      // Predicated region
      $region41: #{tpu_custom_call.1} parent=39 // pred_check
        %p252 = pneg %p36
      $region42: #{tpu_custom_call.1} parent=39 // pred_check_branch
        %254 = sbr.rel (%p252) target = $region44
      $region43: #{tpu_custom_call.1} parent=39 // pred_region
        %s255 = smul.u32 16, %s16
        %p256 = scmp.lt.s32.totalorder %s255, 63
        %s257 = scalar_select %p256, %s255, 63
        %s258 = smul.addr %s257, 4
        %s259 = scalar_lea.vmem %s0, %s258
        %s260 = smul.u32 16, %s16
      $region44: #{tpu_custom_call.1} parent=39 // pred_fallthru
        _
      // Predicated region
      $region45: #{tpu_custom_call.1} parent=39 // pred_check
        %p261 = pneg %p62
      $region46: #{tpu_custom_call.1} parent=39 // pred_check_branch
        %263 = sbr.rel (%p261) target = $region48
      $region47: #{tpu_custom_call.1} parent=39 // pred_region
        %p264 = scmp.lt.s32.totalorder %s16, 3
        %s265 = scalar_select %p264, %s16, 3
        %s266 = scalar_lea.vmem %s1, %s265
      $region48: #{tpu_custom_call.1} parent=39 // pred_fallthru
        _
    $region40: #{tpu_custom_call.1} parent=5 // pred_fallthru
      _
    %p267 = scmp.le.s32.totalorder 1, %s16
    %p268 = scmp.lt.s32.totalorder %s16, 5
    %p269 = pnand %p267, %p268
    %p270 = pneg %p269
    // Predicated region
    $region49: #{tpu_custom_call.1} parent=5 // pred_check
      _
    $region50: #{tpu_custom_call.1} parent=5 // pred_check_branch
      %272 = sbr.rel (%p269) target = $region52
    $region51: #{tpu_custom_call.1} parent=5 // pred_region
      %s273 = ssub.s32 %s16, 1
      %s274 = smul.u32 16, %s21
      %p275 = scmp.lt.s32.totalorder %s274, 63
      %s276 = scalar_select %p275, %s274, 63
      %s277 = smul.addr %s276, 4
      %s278 = scalar_lea.vmem %s0, %s277
      %p279 = pneg %p42
      %p280 = pneg %p39
      %p281 = scmp.lt.s32.totalorder %s21, 3
      %s282 = scalar_select %p281, %s21, 3
      %s283 = scalar_lea.vmem %s1, %s282
      %p284 = pneg %p68
      %p285 = pneg %p65
      %p286 = pneg %p89
      %p287 = pneg %p86
      %p288 = pneg %p110
      %p289 = pneg %p107
      %p290 = pneg %p131
      %p291 = pneg %p128
      %p292 = pneg %p152
      %p293 = pneg %p149
      %p294 = pneg %p173
      %p295 = pneg %p170
      %p296 = pneg %p194
      %p297 = pneg %p191
      %p298 = pneg %p215
      %p299 = pneg %p212
      %s300 = smul.u32 16, %s21
      %p301 = scmp.lt.s32.totalorder %s300, 63
      %s302 = scalar_select %p301, %s300, 63
      %s303 = smul.addr %s302, 4
      %s304 = scalar_lea.vmem %s0, %s303
      %s305 = smul.u32 16, %s21
      %p306 = scmp.lt.s32.totalorder %s21, 3
      %s307 = scalar_select %p306, %s21, 3
      %s308 = scalar_lea.vmem %s1, %s307
      %p310 = scmp.eq.s32.totalorder %s21, 0
      // Predicated region
      $region53: #{tpu_custom_call.1} parent=51 // pred_check
        %p311 = pneg %p310
      $region54: #{tpu_custom_call.1} parent=51 // pred_check_branch
        %313 = sbr.rel (%p311) target = $region56
      $region55: #{tpu_custom_call.1} parent=51 // pred_region
        %vm314 = vcmask 254976
        %315 = vst.msk [vmem:[#allocation2] sm:$0x3] %vm314, 0.0
        %vm316 = vcmask 1024
        %317 = vst.msk [vmem:[#allocation3] sm:$0x3] %vm316, 0.0
      $region56: #{tpu_custom_call.1} parent=51 // pred_fallthru
        _
      %v318 = vld [vmem:[%s304] sm:$0xf]
      %v319 = vld [vmem:[%s304 + $0x4] sm:$0xf]
      %v320 = vld [vmem:[%s304 + $0x8] sm:$0xf]
      %v321 = vld [vmem:[%s304 + $0xc] sm:$0xf]
      %v322 = vld [vmem:[%s304 + $0x10] sm:$0xf]
      %v323 = vld [vmem:[%s304 + $0x14] sm:$0xf]
      %v324 = vld [vmem:[%s304 + $0x18] sm:$0xf]
      %v325 = vld [vmem:[%s304 + $0x1c] sm:$0xf]
      %v326 = vld [vmem:[%s304 + $0x20] sm:$0xf]
      %v327 = vld [vmem:[%s304 + $0x24] sm:$0xf]
      %v328 = vld [vmem:[%s304 + $0x28] sm:$0xf]
      %v329 = vld [vmem:[%s304 + $0x2c] sm:$0xf]
      %v330 = vld [vmem:[%s304 + $0x30] sm:$0xf]
      %v331 = vld [vmem:[%s304 + $0x34] sm:$0xf]
      %v332 = vld [vmem:[%s304 + $0x38] sm:$0xf]
      %v333 = vld [vmem:[%s304 + $0x3c] sm:$0xf]
      %v334 = vld [vmem:[%s2] sm:$0xf]
      %v335 = vld [vmem:[%s3] sm:$0x1]
      %v337 = vlaneseq
      %v338 = vshrl.u32 %v337, 7
      %v339 = vsub.s32 0, %v338
      %v340 = vrot.slane %v335, %v339
      %v358 = vunpack.c.l.b16 %v318
      %v359 = vunpack.c.l.b16 %v319
      %v360 = vunpack.c.l.b16 %v320
      %v361 = vunpack.c.l.b16 %v321
      %v362 = vunpack.c.l.b16 %v322
      %v363 = vunpack.c.l.b16 %v323
      %v364 = vunpack.c.l.b16 %v324
      %v365 = vunpack.c.l.b16 %v325
      %v366 = vunpack.c.l.b16 %v326
      %v367 = vunpack.c.l.b16 %v327
      %v368 = vunpack.c.l.b16 %v328
      %v369 = vunpack.c.l.b16 %v329
      %v370 = vunpack.c.l.b16 %v330
      %v371 = vunpack.c.l.b16 %v331
      %v372 = vunpack.c.l.b16 %v332
      %v373 = vunpack.c.l.b16 %v333
      %v374 = vpack.c.b16 %v359, %v358
      %v375 = vpack.c.b16 %v361, %v360
      %v376 = vpack.c.b16 %v363, %v362
      %v377 = vpack.c.b16 %v365, %v364
      %v378 = vpack.c.b16 %v367, %v366
      %v379 = vpack.c.b16 %v369, %v368
      %v380 = vpack.c.b16 %v371, %v370
      %v381 = vpack.c.b16 %v373, %v372
      %vm382 = vcmask 64512
      %v384 = vsel %vm382, %v374, 0
      %v387 = vsel %vm382, %v375, 0
      %v390 = vsel %vm382, %v376, 0
      %v393 = vsel %vm382, %v377, 0
      %v396 = vsel %vm382, %v378, 0
      %v399 = vsel %vm382, %v379, 0
      %v402 = vsel %vm382, %v380, 0
      %v405 = vsel %vm382, %v381, 0
      %vm407 = vcmask 1043456
      %v409 = vsel %vm407, %v334, 0
      %411 = vmatprep.subr.bf16.mxu0 0
      %412 = vmatpush1.bf16.msra.mxu0 %v409
      %413 = vmatprep.subr.bf16.mxu0 0
      %414 = vmatpush1.bf16.msra.mxu0 0
      %415 = vmatprep.subr.bf16.mxu0 0
      %416 = vmatpush1.bf16.msra.mxu0 0
      %417 = vmatprep.subr.bf16.mxu0 0
      %418 = vmatpush1.bf16.msra.mxu0 0
      %419 = vmatprep.subr.bf16.mxu0 0
      %420 = vmatpush1.bf16.msra.mxu0 0
      %421 = vmatprep.subr.bf16.mxu0 0
      %422 = vmatpush1.bf16.msra.mxu0 0
      %423 = vmatprep.subr.bf16.mxu0 0
      %424 = vmatpush1.bf16.msra.mxu0 0
      %425 = vmatprep.subr.bf16.mxu0 0
      %426 = vmatpush1.bf16.msra.mxu0 0
      %427 = vmatprep.subr.bf16.mxu0 0
      %428 = vmatpush1.bf16.msra.mxu0 0
      %429 = vmatprep.subr.bf16.mxu0 0
      %430 = vmatpush1.bf16.msra.mxu0 0
      %431 = vmatprep.subr.bf16.mxu0 0
      %432 = vmatpush1.bf16.msra.mxu0 0
      %433 = vmatprep.subr.bf16.mxu0 0
      %434 = vmatpush1.bf16.msra.mxu0 0
      %435 = vmatprep.subr.bf16.mxu0 0
      %436 = vmatpush1.bf16.msra.mxu0 0
      %437 = vmatprep.subr.bf16.mxu0 0
      %438 = vmatpush1.bf16.msra.mxu0 0
      %439 = vmatprep.subr.bf16.mxu0 0
      %440 = vmatpush1.bf16.msra.mxu0 0
      %441 = vmatprep.subr.bf16.mxu0 0
      %442 = vmatpush1.bf16.msra.mxu0 0
      %443 = vmatprep.mubr.bf16.mxu0 0
      %444 = vmatmul.mubr.bf16.gmra.mrb[0].mxu0 %v384
      %v445 = vpop.f32.mrb[0].mxu0
      %v446 = vadd.f32 %v340, %v445
      %v447 = vpop.f32.mrb[0].mxu0
      %v448 = vpop.f32.mrb[0].mxu0
      %v449 = vadd.f32 %v340, %v448
      %v450 = vpop.f32.mrb[0].mxu0
      %451 = vmatprep.mubr.bf16.mxu0 0
      %452 = vmatmul.mubr.bf16.gmra.mrb[0].mxu0 %v387
      %v453 = vpop.f32.mrb[0].mxu0
      %v454 = vadd.f32 %v340, %v453
      %v455 = vpop.f32.mrb[0].mxu0
      %v456 = vpop.f32.mrb[0].mxu0
      %v457 = vadd.f32 %v340, %v456
      %v458 = vpop.f32.mrb[0].mxu0
      %459 = vmatprep.mubr.bf16.mxu0 0
      %460 = vmatmul.mubr.bf16.gmra.mrb[0].mxu0 %v390
      %v461 = vpop.f32.mrb[0].mxu0
      %v462 = vadd.f32 %v340, %v461
      %v463 = vpop.f32.mrb[0].mxu0
      %v464 = vpop.f32.mrb[0].mxu0
      %v465 = vadd.f32 %v340, %v464
      %v466 = vpop.f32.mrb[0].mxu0
      %467 = vmatprep.mubr.bf16.mxu0 0
      %468 = vmatmul.mubr.bf16.gmra.mrb[0].mxu0 %v393
      %v469 = vpop.f32.mrb[0].mxu0
      %v470 = vadd.f32 %v340, %v469
      %v471 = vpop.f32.mrb[0].mxu0
      %v472 = vpop.f32.mrb[0].mxu0
      %v473 = vadd.f32 %v340, %v472
      %v474 = vpop.f32.mrb[0].mxu0
      %475 = vmatprep.mubr.bf16.mxu0 0
      %476 = vmatmul.mubr.bf16.gmra.mrb[0].mxu0 %v396
      %v477 = vpop.f32.mrb[0].mxu0
      %v478 = vadd.f32 %v340, %v477
      %v479 = vpop.f32.mrb[0].mxu0
      %v480 = vpop.f32.mrb[0].mxu0
      %v481 = vadd.f32 %v340, %v480
      %v482 = vpop.f32.mrb[0].mxu0
      %483 = vmatprep.mubr.bf16.mxu0 0
      %484 = vmatmul.mubr.bf16.gmra.mrb[0].mxu0 %v399
      %v485 = vpop.f32.mrb[0].mxu0
      %v486 = vadd.f32 %v340, %v485
      %v487 = vpop.f32.mrb[0].mxu0
      %v488 = vpop.f32.mrb[0].mxu0
      %v489 = vadd.f32 %v340, %v488
      %v490 = vpop.f32.mrb[0].mxu0
      %491 = vmatprep.mubr.bf16.mxu0 0
      %492 = vmatmul.mubr.bf16.gmra.mrb[0].mxu0 %v402
      %v493 = vpop.f32.mrb[0].mxu0
      %v494 = vadd.f32 %v340, %v493
      %v495 = vpop.f32.mrb[0].mxu0
      %v496 = vpop.f32.mrb[0].mxu0
      %v497 = vadd.f32 %v340, %v496
      %v498 = vpop.f32.mrb[0].mxu0
      %499 = vmatprep.mubr.bf16.mxu0 0
      %500 = vmatmul.mubr.bf16.gmra.mrb[0].mxu0 %v405
      %v501 = vpop.f32.mrb[0].mxu0
      %v502 = vadd.f32 %v340, %v501
      %v503 = vpop.f32.mrb[0].mxu0
      %v504 = vpop.f32.mrb[0].mxu0
      %v505 = vadd.f32 %v340, %v504
      %v506 = vpop.f32.mrb[0].mxu0
      %507 = vdwg.mxu0
      %v508 = vmax.f32 %v446, 0.0
      %v509 = vmax.f32 %v449, 0.0
      %v510 = vmax.f32 %v454, 0.0
      %v511 = vmax.f32 %v457, 0.0
      %v512 = vmax.f32 %v462, 0.0
      %v513 = vmax.f32 %v465, 0.0
      %v514 = vmax.f32 %v470, 0.0
      %v515 = vmax.f32 %v473, 0.0
      %v516 = vmax.f32 %v478, 0.0
      %v517 = vmax.f32 %v481, 0.0
      %v518 = vmax.f32 %v486, 0.0
      %v519 = vmax.f32 %v489, 0.0
      %v520 = vmax.f32 %v494, 0.0
      %v521 = vmax.f32 %v497, 0.0
      %v522 = vmax.f32 %v502, 0.0
      %v523 = vmax.f32 %v505, 0.0
      %v524 = vpack.c.bf16 %v509, %v508
      %v525 = vpack.c.bf16 %v511, %v510
      %v526 = vpack.c.bf16 %v513, %v512
      %v527 = vpack.c.bf16 %v515, %v514
      %v528 = vpack.c.bf16 %v517, %v516
      %v529 = vpack.c.bf16 %v519, %v518
      %v530 = vpack.c.bf16 %v521, %v520
      %v531 = vpack.c.bf16 %v523, %v522
      %v532 = vld [vmem:[%s4] sm:$0xf]
      %v533 = vld [vmem:[%s4 + $0x4] sm:$0xf]
      %v534 = vld [vmem:[%s4 + $0x8] sm:$0xf]
      %v535 = vld [vmem:[%s4 + $0xc] sm:$0xf]
      %v536 = vld [vmem:[%s5] sm:$0x1]
      %v538 = vlaneseq
      %v539 = vshrl.u32 %v538, 7
      %v540 = vsub.s32 0, %v539
      %v541 = vrot.slane %v536, %v540
      %v547 = vunpack.c.l.b16 %v532
      %v548 = vunpack.c.l.b16 %v533
      %v549 = vunpack.c.l.b16 %v534
      %v550 = vunpack.c.l.b16 %v535
      %v551 = vpack.c.b16 %v548, %v547
      %v552 = vpack.c.b16 %v550, %v549
      %vm555 = vcmask 261120
      %v557 = vsel %vm555, %v524, 0
      %v560 = vsel %vm555, %v525, 0
      %v563 = vsel %vm555, %v526, 0
      %v566 = vsel %vm555, %v527, 0
      %v569 = vsel %vm555, %v528, 0
      %v572 = vsel %vm555, %v529, 0
      %v575 = vsel %vm555, %v530, 0
      %v578 = vsel %vm555, %v531, 0
      %580 = vmatprep.subr.bf16.mxu0 0
      %581 = vmatpush1.bf16.msra.mxu0 %v551
      %582 = vmatprep.subr.bf16.mxu0 0
      %583 = vmatpush1.bf16.msra.mxu0 %v552
      %584 = vmatprep.subr.bf16.mxu0 0
      %585 = vmatpush1.bf16.msra.mxu0 0
      %586 = vmatprep.subr.bf16.mxu0 0
      %587 = vmatpush1.bf16.msra.mxu0 0
      %588 = vmatprep.subr.bf16.mxu0 0
      %589 = vmatpush1.bf16.msra.mxu0 0
      %590 = vmatprep.subr.bf16.mxu0 0
      %591 = vmatpush1.bf16.msra.mxu0 0
      %592 = vmatprep.subr.bf16.mxu0 0
      %593 = vmatpush1.bf16.msra.mxu0 0
      %594 = vmatprep.subr.bf16.mxu0 0
      %595 = vmatpush1.bf16.msra.mxu0 0
      %596 = vmatprep.subr.bf16.mxu0 0
      %597 = vmatpush1.bf16.msra.mxu0 0
      %598 = vmatprep.subr.bf16.mxu0 0
      %599 = vmatpush1.bf16.msra.mxu0 0
      %600 = vmatprep.subr.bf16.mxu0 0
      %601 = vmatpush1.bf16.msra.mxu0 0
      %602 = vmatprep.subr.bf16.mxu0 0
      %603 = vmatpush1.bf16.msra.mxu0 0
      %604 = vmatprep.subr.bf16.mxu0 0
      %605 = vmatpush1.bf16.msra.mxu0 0
      %606 = vmatprep.subr.bf16.mxu0 0
      %607 = vmatpush1.bf16.msra.mxu0 0
      %608 = vmatprep.subr.bf16.mxu0 0
      %609 = vmatpush1.bf16.msra.mxu0 0
      %610 = vmatprep.subr.bf16.mxu0 0
      %611 = vmatpush1.bf16.msra.mxu0 0
      %612 = vmatprep.mubr.bf16.mxu0 0
      %613 = vmatmul.mubr.bf16.gmra.mrb[0].mxu0 %v557
      %v614 = vpop.f32.mrb[0].mxu0
      %v615 = vadd.f32 %v541, %v614
      %v616 = vpop.f32.mrb[0].mxu0
      %v617 = vpop.f32.mrb[0].mxu0
      %v618 = vadd.f32 %v541, %v617
      %v619 = vpop.f32.mrb[0].mxu0
      %620 = vmatprep.mubr.bf16.mxu0 0
      %621 = vmatmul.mubr.bf16.gmra.mrb[0].mxu0 %v560
      %v622 = vpop.f32.mrb[0].mxu0
      %v623 = vadd.f32 %v541, %v622
      %v624 = vpop.f32.mrb[0].mxu0
      %v625 = vpop.f32.mrb[0].mxu0
      %v626 = vadd.f32 %v541, %v625
      %v627 = vpop.f32.mrb[0].mxu0
      %628 = vmatprep.mubr.bf16.mxu0 0
      %629 = vmatmul.mubr.bf16.gmra.mrb[0].mxu0 %v563
      %v630 = vpop.f32.mrb[0].mxu0
      %v631 = vadd.f32 %v541, %v630
      %v632 = vpop.f32.mrb[0].mxu0
      %v633 = vpop.f32.mrb[0].mxu0
      %v634 = vadd.f32 %v541, %v633
      %v635 = vpop.f32.mrb[0].mxu0
      %636 = vmatprep.mubr.bf16.mxu0 0
      %637 = vmatmul.mubr.bf16.gmra.mrb[0].mxu0 %v566
      %v638 = vpop.f32.mrb[0].mxu0
      %v639 = vadd.f32 %v541, %v638
      %v640 = vpop.f32.mrb[0].mxu0
      %v641 = vpop.f32.mrb[0].mxu0
      %v642 = vadd.f32 %v541, %v641
      %v643 = vpop.f32.mrb[0].mxu0
      %644 = vmatprep.mubr.bf16.mxu0 0
      %645 = vmatmul.mubr.bf16.gmra.mrb[0].mxu0 %v569
      %v646 = vpop.f32.mrb[0].mxu0
      %v647 = vadd.f32 %v541, %v646
      %v648 = vpop.f32.mrb[0].mxu0
      %v649 = vpop.f32.mrb[0].mxu0
      %v650 = vadd.f32 %v541, %v649
      %v651 = vpop.f32.mrb[0].mxu0
      %652 = vmatprep.mubr.bf16.mxu0 0
      %653 = vmatmul.mubr.bf16.gmra.mrb[0].mxu0 %v572
      %v654 = vpop.f32.mrb[0].mxu0
      %v655 = vadd.f32 %v541, %v654
      %v656 = vpop.f32.mrb[0].mxu0
      %v657 = vpop.f32.mrb[0].mxu0
      %v658 = vadd.f32 %v541, %v657
      %v659 = vpop.f32.mrb[0].mxu0
      %660 = vmatprep.mubr.bf16.mxu0 0
      %661 = vmatmul.mubr.bf16.gmra.mrb[0].mxu0 %v575
      %v662 = vpop.f32.mrb[0].mxu0
      %v663 = vadd.f32 %v541, %v662
      %v664 = vpop.f32.mrb[0].mxu0
      %v665 = vpop.f32.mrb[0].mxu0
      %v666 = vadd.f32 %v541, %v665
      %v667 = vpop.f32.mrb[0].mxu0
      %668 = vmatprep.mubr.bf16.mxu0 0
      %669 = vmatmul.mubr.bf16.gmra.mrb[0].mxu0 %v578
      %v670 = vpop.f32.mrb[0].mxu0
      %v671 = vadd.f32 %v541, %v670
      %v672 = vpop.f32.mrb[0].mxu0
      %v673 = vpop.f32.mrb[0].mxu0
      %v674 = vadd.f32 %v541, %v673
      %v675 = vpop.f32.mrb[0].mxu0
      %676 = vdwg.mxu0
      %v677 = vmax.f32 %v615, 0.0
      %v678 = vmax.f32 %v618, 0.0
      %v679 = vmax.f32 %v623, 0.0
      %v680 = vmax.f32 %v626, 0.0
      %v681 = vmax.f32 %v631, 0.0
      %v682 = vmax.f32 %v634, 0.0
      %v683 = vmax.f32 %v639, 0.0
      %v684 = vmax.f32 %v642, 0.0
      %v685 = vmax.f32 %v647, 0.0
      %v686 = vmax.f32 %v650, 0.0
      %v687 = vmax.f32 %v655, 0.0
      %v688 = vmax.f32 %v658, 0.0
      %v689 = vmax.f32 %v663, 0.0
      %v690 = vmax.f32 %v666, 0.0
      %v691 = vmax.f32 %v671, 0.0
      %v692 = vmax.f32 %v674, 0.0
      %v693 = vld [vmem:[%s308] sm:$0x1]
      %v694 = vld [vmem:[#allocation2] sm:$0x3]
      %v695 = vpack.c.bf16 %v678, %v677
      %v696 = vpack.c.bf16 %v680, %v679
      %v697 = vpack.c.bf16 %v682, %v681
      %v698 = vpack.c.bf16 %v684, %v683
      %v699 = vpack.c.bf16 %v686, %v685
      %v700 = vpack.c.bf16 %v688, %v687
      %v701 = vpack.c.bf16 %v690, %v689
      %v702 = vpack.c.bf16 %v692, %v691
      %703 = vmatprep.subr.bf16.mxu0 0
      %704 = vmatpush1.bf16.msra.mxu0 %v695
      %705 = vmatprep.subr.bf16.mxu0 0
      %706 = vmatpush1.bf16.msra.mxu0 %v696
      %707 = vmatprep.subr.bf16.mxu0 0
      %708 = vmatpush1.bf16.msra.mxu0 %v697
      %709 = vmatprep.subr.bf16.mxu0 0
      %710 = vmatpush1.bf16.msra.mxu0 %v698
      %711 = vmatprep.subr.bf16.mxu0 0
      %712 = vmatpush1.bf16.msra.mxu0 %v699
      %713 = vmatprep.subr.bf16.mxu0 0
      %714 = vmatpush1.bf16.msra.mxu0 %v700
      %715 = vmatprep.subr.bf16.mxu0 0
      %716 = vmatpush1.bf16.msra.mxu0 %v701
      %717 = vmatprep.subr.bf16.mxu0 0
      %718 = vmatpush1.bf16.msra.mxu0 %v702
      %719 = vmatprep.subr.bf16.mxu0 0
      %720 = vmatpush1.bf16.msra.mxu0 0
      %721 = vmatprep.subr.bf16.mxu0 0
      %722 = vmatpush1.bf16.msra.mxu0 0
      %723 = vmatprep.subr.bf16.mxu0 0
      %724 = vmatpush1.bf16.msra.mxu0 0
      %725 = vmatprep.subr.bf16.mxu0 0
      %726 = vmatpush1.bf16.msra.mxu0 0
      %727 = vmatprep.subr.bf16.mxu0 0
      %728 = vmatpush1.bf16.msra.mxu0 0
      %729 = vmatprep.subr.bf16.mxu0 0
      %730 = vmatpush1.bf16.msra.mxu0 0
      %731 = vmatprep.subr.bf16.mxu0 0
      %732 = vmatpush1.bf16.msra.mxu0 0
      %733 = vmatprep.subr.bf16.mxu0 0
      %734 = vmatpush1.bf16.msra.mxu0 0
      %735 = vmatprep.mubr.bf16.mxu0 0
      %736 = vmatmul.mubr.bf16.gmra.mrb[0].mxu0 %v693
      %v737 = vpop.f32.mrb[0].mxu0
      %v738 = vadd.f32 0.0, %v737
      %v739 = vpop.f32.mrb[0].mxu0
      %v740 = vpop.f32.mrb[0].mxu0
      %v741 = vpop.f32.mrb[0].mxu0
      %742 = vdwg.mxu0
      %v743 = vadd.f32 %v694, %v738
      %vm744 = vcmask 254976
      %745 = vst.msk [vmem:[#allocation2] sm:$0x3] %vm744, %v743
      %v746 = vld [vmem:[#allocation3] sm:$0x3]
      %v747 = vunpack.c.l.bf16 %v693
      %vm748 = vcmask 1041408
      %v749 = vsel %vm748, %v747, 0.0
      %750 = vadd.xlane.f32.xlu0 %v749
      %v751 = vpop.xlane.xlu0 %750
      %v752 = vadd.f32 %v746, %v751
      %vm753 = vcmask 1024
      %754 = vst.msk [vmem:[#allocation3] sm:$0x3] %vm753, %v752
      %p755 = scmp.eq.s32.totalorder %s21, 3
      // Predicated region
      $region57: #{tpu_custom_call.1} parent=51 // pred_check
        %p756 = pneg %p755
      $region58: #{tpu_custom_call.1} parent=51 // pred_check_branch
        %758 = sbr.rel (%p756) target = $region60
      $region59: #{tpu_custom_call.1} parent=51 // pred_region
        %v759 = vld [vmem:[#allocation2] sm:$0x3]
        %v760 = vld [vmem:[%s6] sm:$0xff]
        %v761 = vld [vmem:[%s6 + $0x8] sm:$0xff]
        %v762 = vld [vmem:[%s6 + $0x10] sm:$0xff]
        %v763 = vld [vmem:[%s6 + $0x18] sm:$0xff]
        %v764 = vld [vmem:[#allocation4] sm:$0x1]
        %v765 = vld [vmem:[#allocation3] sm:$0x3]
        %v767 = vlaneseq
        %v768 = vshrl.u32 %v767, 7
        %v769 = vsub.s32 0, %v768
        %v770 = vrot.slane %v764, %v769
        %v772 = vmul.f32 %v770, %v765
        %v774 = vsel %vm555, %v759, 0
        %776 = vmatprep.subr.mxu0 0.0
        %777 = vmatpush1.msra.mxu0 %v760
        %778 = vmatprep.subr.mxu0 0.0
        %779 = vmatpush1.msra.mxu0 %v761
        %780 = vmatprep.subr.mxu0 0.0
        %781 = vmatpush1.msra.mxu0 %v762
        %782 = vmatprep.subr.mxu0 0.0
        %783 = vmatpush1.msra.mxu0 %v763
        %784 = vmatprep.subr.mxu0 0.0
        %785 = vmatpush1.msra.mxu0 0.0
        %786 = vmatprep.subr.mxu0 0.0
        %787 = vmatpush1.msra.mxu0 0.0
        %788 = vmatprep.subr.mxu0 0.0
        %789 = vmatpush1.msra.mxu0 0.0
        %790 = vmatprep.subr.mxu0 0.0
        %791 = vmatpush1.msra.mxu0 0.0
        %792 = vmatprep.subr.mxu0 0.0
        %793 = vmatpush1.msra.mxu0 0.0
        %794 = vmatprep.subr.mxu0 0.0
        %795 = vmatpush1.msra.mxu0 0.0
        %796 = vmatprep.subr.mxu0 0.0
        %797 = vmatpush1.msra.mxu0 0.0
        %798 = vmatprep.subr.mxu0 0.0
        %799 = vmatpush1.msra.mxu0 0.0
        %800 = vmatprep.subr.mxu0 0.0
        %801 = vmatpush1.msra.mxu0 0.0
        %802 = vmatprep.subr.mxu0 0.0
        %803 = vmatpush1.msra.mxu0 0.0
        %804 = vmatprep.subr.mxu0 0.0
        %805 = vmatpush1.msra.mxu0 0.0
        %806 = vmatprep.subr.mxu0 0.0
        %807 = vmatpush1.msra.mxu0 0.0
        %808 = vmatprep.subr.mxu0 0.0
        %809 = vmatpush1.msra.mxu0 0.0
        %810 = vmatprep.subr.mxu0 0.0
        %811 = vmatpush1.msra.mxu0 0.0
        %812 = vmatprep.subr.mxu0 0.0
        %813 = vmatpush1.msra.mxu0 0.0
        %814 = vmatprep.subr.mxu0 0.0
        %815 = vmatpush1.msra.mxu0 0.0
        %816 = vmatprep.subr.mxu0 0.0
        %817 = vmatpush1.msra.mxu0 0.0
        %818 = vmatprep.subr.mxu0 0.0
        %819 = vmatpush1.msra.mxu0 0.0
        %820 = vmatprep.subr.mxu0 0.0
        %821 = vmatpush1.msra.mxu0 0.0
        %822 = vmatprep.subr.mxu0 0.0
        %823 = vmatpush1.msra.mxu0 0.0
        %824 = vmatprep.subr.mxu0 0.0
        %825 = vmatpush1.msra.mxu0 0.0
        %826 = vmatprep.subr.mxu0 0.0
        %827 = vmatpush1.msra.mxu0 0.0
        %828 = vmatprep.subr.mxu0 0.0
        %829 = vmatpush1.msra.mxu0 0.0
        %830 = vmatprep.subr.mxu0 0.0
        %831 = vmatpush1.msra.mxu0 0.0
        %832 = vmatprep.subr.mxu0 0.0
        %833 = vmatpush1.msra.mxu0 0.0
        %834 = vmatprep.subr.mxu0 0.0
        %835 = vmatpush1.msra.mxu0 0.0
        %836 = vmatprep.subr.mxu0 0.0
        %837 = vmatpush1.msra.mxu0 0.0
        %838 = vmatprep.subr.mxu0 0.0
        %839 = vmatpush1.msra.mxu0 0.0
        %840 = vmatprep.mubr.f32.mxu0 0.0
        %841 = vmatmul.mubr.f32.gmra.mrb[0].mxu0 %v774
        %v842 = vpop.f32.mrb[0].mxu0
        %v843 = vadd.f32 %v772, %v842
        %v844 = vpop.f32.mrb[0].mxu0
        %845 = vdwg.mxu0
        %v846 = vmul.f32 %v843, 0.5
        %847 = vst.msk [vmem:[%s8] sm:$0x3] %vm753, %v846
      $region60: #{tpu_custom_call.1} parent=51 // pred_fallthru
        _
      // Predicated region
      $region61: #{tpu_custom_call.1} parent=51 // pred_check
        %p848 = pneg %p212
      $region62: #{tpu_custom_call.1} parent=51 // pred_check_branch
        %850 = sbr.rel (%p848) target = $region64
      $region63: #{tpu_custom_call.1} parent=51 // pred_region
        _
      $region64: #{tpu_custom_call.1} parent=51 // pred_fallthru
        _
      // Predicated region
      $region65: #{tpu_custom_call.1} parent=51 // pred_check
        %p851 = pneg %p212
      $region66: #{tpu_custom_call.1} parent=51 // pred_check_branch
        %853 = sbr.rel (%p851) target = $region68
      $region67: #{tpu_custom_call.1} parent=51 // pred_region
        _
      $region68: #{tpu_custom_call.1} parent=51 // pred_fallthru
        _
    $region52: #{tpu_custom_call.1} parent=5 // pred_fallthru
      _
    %p854 = scmp.le.s32.totalorder 2, %s16
    // Predicated region
    $region69: #{tpu_custom_call.1} parent=5 // pred_check
      %p855 = pneg %p854
    $region70: #{tpu_custom_call.1} parent=5 // pred_check_branch
      %857 = sbr.rel (%p855) target = $region72
    $region71: #{tpu_custom_call.1} parent=5 // pred_region
      %s858 = ssub.s32 %s16, 2
    $region72: #{tpu_custom_call.1} parent=5 // pred_fallthru
      _
  $region6: #{tpu_custom_call.1} parent=0 // loop_footer
    %s20 = sadd.s32 1, %s16
  $region7: #{tpu_custom_call.1} parent=0 // loop_footer_branch
    %15 = sbr.rel target = $region3
  $region8: #{tpu_custom_call.1} parent=0 // loop_exit
    _

</llo_original>
